<compile_context>
chip_gen: v5e
topology: v5e:2x2
jax: 0.10.0
libtpu: 0.0.40
codegen_flags: <defaults>
</compile_context>

<pallas_src>
import functools
import math

import numpy as np
import jax
import jax.numpy as jnp
from jax.experimental import pallas as pl
from jax.experimental.pallas import tpu as pltpu


def _lcm(a, b):
    return a * b // math.gcd(a, b)


def _round_up(a, b):
    return ((a + b - 1) // b) * b


def _cdiv(a, b):
    return (a + b - 1) // b


def make_level_mask(level_sizes):
    """Same semantics as LabelSmoothing.make_level_mask (numpy)."""
    nspecial = level_sizes[0]
    seq_len = len(level_sizes)
    nlabels = sum(level_sizes)
    mask = np.zeros((seq_len, nlabels), dtype=np.float32)
    for i in range(1, seq_len):
        start = sum(level_sizes[:i])
        end = sum(level_sizes[:i + 1])
        mask[i - 1, :nspecial] = 1.0
        mask[i - 1, start:end] = 1.0
    mask[seq_len - 1, :nspecial] = 1.0
    return mask


def _label_smoothing_kernel(x_ref, mask_ref, smooth_ref, logb_ref, tgt_ref,
                            o_ref, acc_ref, *, confidence, log_confidence,
                            padding_idx, criterion):
    step = pl.program_id(1)

    @pl.when(step == 0)
    def _init():
        acc_ref[...] = jnp.zeros_like(acc_ref)

    x = x_ref[...].astype(jnp.float32)        # (T, V), cast in-kernel (bf16 ok)
    mask = mask_ref[...].astype(jnp.float32)  # bf16 0/1 level mask -> exact f32
    smooth = smooth_ref[...]                  # (T, 1) per-level smoothing const
    tgt = tgt_ref[...]                        # (T, 1) int32

    t, v = x.shape
    col = jax.lax.broadcasted_iota(jnp.int32, (t, v), 1)
    is_tgt = col == tgt                       # scatter_(1, target, confidence)
    pad_row = tgt == padding_idx              # rows whose target is padding

    base = mask * smooth                      # pad column already zeroed in mask
    td = jnp.where(is_tgt, confidence, base)
    td = jnp.where(pad_row, 0.0, td)

    if criterion == "kldiv":
        # log(td) without an elementwise log: td is either `confidence`
        # (compile-time log constant), a per-level smoothed constant
        # (host-precomputed log column), or 0 (excluded by td > 0, matching
        # torch KLDivLoss' zero-target handling).
        log_td = jnp.where(is_tgt, log_confidence, logb_ref[...])
        elem = jnp.where(td > 0.0, td * (log_td - x), 0.0)
    else:  # "ce": CrossEntropyLoss with soft targets, reduction='sum'
        mx = jnp.max(x, axis=1, keepdims=True)
        lse = mx + jnp.log(jnp.sum(jnp.exp(x - mx), axis=1, keepdims=True))
        elem = td * (lse - x)                 # == -td * log_softmax(x)

    # Layout-aligned partial reduce: fold sublane groups together with plain
    # vreg adds (8-row aligned static slices) into the small (8, V)
    # accumulator -- no full-tile accumulator read-modify-write.
    red = elem[0:8, :]
    for g in range(1, t // 8):
        red = red + elem[g * 8:(g + 1) * 8, :]
    acc_ref[...] += red

    @pl.when(step == pl.num_programs(1) - 1)
    def _finish():
        total = jnp.sum(acc_ref[...])
        o_ref[...] = jnp.broadcast_to(total, o_ref.shape)


class LabelSmoothingPallas:
    """JAX/Pallas port of HECTOR LabelSmoothing forward pass."""

    _MAX_TILE_ROWS = 2048

    def __init__(self, level_sizes, padding_idx, criterion, smoothing=0.0,
                 num_row_slices=None):
        if criterion not in ("kldiv", "ce"):
            raise Exception("Unknown criterion")
        self.criterion = criterion
        self.padding_idx = padding_idx
        self.confidence = 1.0 - smoothing
        self.smoothing = smoothing
        self.vocab_size = sum(level_sizes)
        self.n_levels = len(level_sizes)

        if num_row_slices is None:
            # One row slice per TensorCore: 1 on v5e/v6e, 2 on 2-TC chips.
            num_row_slices = 1
            try:
                kind = jax.devices()[0].device_kind.lower()
                if "v7" in kind:
                    num_row_slices = 2
            except Exception:
                pass
        self.num_row_slices = max(1, int(num_row_slices))

        mask_np = make_level_mask(level_sizes)               # (nlevels, V)
        self.level_mask = jnp.asarray(mask_np)               # for reference use

        # Host-precomputed per-level constants (static: depend only on
        # level_sizes / smoothing / padding_idx).
        counts = mask_np.sum(axis=1, keepdims=True)          # (nlevels, 1)
        with np.errstate(divide="ignore", invalid="ignore"):
            smooth = np.float32(smoothing) / (counts - 2.0)  # inf if count<=2 (same as torch)
            logs = np.where(smooth > 0.0,
                            np.log(np.where(smooth > 0.0, smooth, 1.0)), 0.0)
        mask_np = mask_np.copy()
        mask_np[:, padding_idx] = 0.0                        # true_dist[:, pad] = 0
        self._mask_np = mask_np.astype(np.float32)           # 0/1 (exact in bf16)
        self._smooth_np = smooth.astype(np.float32)          # (nlevels, 1)
        self._logs_np = logs.astype(np.float32)              # (nlevels, 1)
        self._log_confidence = (float(np.log(self.confidence))
                                if self.confidence > 0.0 else 0.0)

        # ---- VMEM budget / tile sizing (derived per TPU generation) ----
        try:
            vmem_cap = int(pltpu.get_tpu_info().vmem_capacity_bytes)
        except Exception:
            vmem_cap = 64 * 1024 * 1024                      # conservative fallback
        self._vmem_limit = max(32 << 20,
                               min(int(vmem_cap * 0.55), vmem_cap - (4 << 20)))
        tile_budget = int(vmem_cap * 0.45)

        # Row-tile size: multiple of both the level period (resident pattern
        # alignment) and 8 (sublane tiling), as big as the VMEM budget allows.
        self._unit = _lcm(self.n_levels, 8)
        v_pad = _round_up(self.vocab_size, 128)              # lane padding
        # Per-row VMEM bytes: streamed x (double-buffered, worst case f32),
        # resident bf16 level mask (double-buffered), and three lane-padded
        # (tile_n, 1) columns (smooth / log / targets), double-buffered.
        per_row = 2 * v_pad * 4 + 2 * v_pad * 2 + 2 * 3 * 128 * 4
        cap_rows = max(self._unit, tile_budget // per_row)
        self._tile_n = self._unit * max(
            1, min(cap_rows, self._MAX_TILE_ROWS) // self._unit)

        self._pattern_cache = {}
        self._call_cache = {}

    # ---- cached helpers -------------------------------------------------

    def _get_patterns(self, tile_n):
        pats = self._pattern_cache.get(tile_n)
        if pats is None:
            reps = tile_n // self.n_levels
            pats = (
                jnp.asarray(np.tile(self._mask_np, (reps, 1)), jnp.bfloat16),
                jnp.asarray(np.tile(self._smooth_np, (reps, 1)), jnp.float32),
                jnp.asarray(np.tile(self._logs_np, (reps, 1)), jnp.float32),
            )
            self._pattern_cache[tile_n] = pats
        return pats

    def _get_call(self, n, n_pad, tile_n, slices, tiles_per_slice, x_dtype):
        key = (n, n_pad, tile_n, slices, tiles_per_slice, str(x_dtype))
        fn = self._call_cache.get(key)
        if fn is not None:
            return fn

        v = self.vocab_size
        padding_idx = self.padding_idx
        kernel = functools.partial(
            _label_smoothing_kernel,
            confidence=self.confidence,
            log_confidence=self._log_confidence,
            padding_idx=padding_idx,
            criterion=self.criterion,
        )
        row_map = lambda c, i: (c * tiles_per_slice + i, 0)
        const_map = lambda c, i: (0, 0)

        pallas_fn = pl.pallas_call(
            kernel,
            out_shape=jax.ShapeDtypeStruct((slices, 8, 128), jnp.float32),
            grid=(slices, tiles_per_slice),
            in_specs=[
                pl.BlockSpec((tile_n, v), row_map),      # x (streamed, native dtype)
                pl.BlockSpec((tile_n, v), const_map),    # bf16 level mask (resident)
                pl.BlockSpec((tile_n, 1), const_map),    # per-level smoothing column
                pl.BlockSpec((tile_n, 1), const_map),    # per-level log column
                pl.BlockSpec((tile_n, 1), row_map),      # targets (streamed, tiny)
            ],
            out_specs=pl.BlockSpec((1, 8, 128), lambda c, i: (c, 0, 0)),
            scratch_shapes=[pltpu.VMEM((8, v), jnp.float32)],
            compiler_params=pltpu.CompilerParams(
                dimension_semantics=("parallel", "arbitrary"),
                vmem_limit_bytes=self._vmem_limit),
        )

        def call(x, target, mask_tile, smooth_col, log_col):
            x2 = x.reshape(-1, v)                        # keep native dtype
            tgt2 = target.reshape(-1, 1).astype(jnp.int32)
            pad = n_pad - n
            if pad:
                # Padded rows get target == padding_idx => contribute exactly 0.
                x2 = jnp.pad(x2, ((0, pad), (0, 0)))
                tgt2 = jnp.pad(tgt2, ((0, pad), (0, 0)),
                               constant_values=padding_idx)
            partials = pallas_fn(x2, mask_tile, smooth_col, log_col, tgt2)
            return jnp.sum(partials[:, 0, 0])

        fn = jax.jit(call)
        self._call_cache[key] = fn
        return fn

    # ---- public API ------------------------------------------------------

    def __call__(self, x, target):
        # x: (batch, seq, vocab) ; target: (batch, seq) int
        b, s, v = x.shape
        assert s == self.n_levels, "tgt_seq_len must equal number of levels"
        assert v == self.vocab_size
        n = b * s

        tile_n = min(self._tile_n, _round_up(n, self._unit))
        tiles_total = _cdiv(n, tile_n)
        slices = max(1, min(self.num_row_slices, tiles_total))
        tiles_per_slice = _cdiv(tiles_total, slices)
        n_pad = tile_n * tiles_per_slice * slices

        mask_tile, smooth_col, log_col = self._get_patterns(tile_n)
        fn = self._get_call(n, n_pad, tile_n, slices, tiles_per_slice, x.dtype)
        return fn(x, target, mask_tile, smooth_col, log_col)


def _reference(x, target, level_mask, confidence, smoothing, padding_idx,
               criterion):
    """Pure-JAX reference for a correctness check."""
    b, s, v = x.shape
    n = b * s
    x2 = x.reshape(n, v).astype(jnp.float32)
    tgt = target.reshape(n)
    mask = jnp.tile(level_mask, (b, 1))
    counts = jnp.sum(mask, axis=1, keepdims=True)
    td = mask * (smoothing / (counts - 2.0))
    td = td.at[jnp.arange(n), tgt].set(confidence)
    td = td.at[:, padding_idx].set(0.0)
    td = jnp.where((tgt == padding_idx)[:, None], 0.0, td)
    if criterion == "kldiv":
        elem = jnp.where(td > 0.0,
                         td * (jnp.log(jnp.where(td > 0, td, 1.0)) - x2), 0.0)
        return jnp.sum(elem)
    lsm = jax.nn.log_softmax(x2, axis=-1)
    return -jnp.sum(td * lsm)


if __name__ == "__main__":
    level_sizes = [4, 8, 8, 12]      # nlevels = 4, vocab = 32
    padding_idx = 0
    smoothing = 0.1

    seq = len(level_sizes)           # tgt_seq_len must equal number of levels
    vocab = sum(level_sizes)

    # --- single-tile path (batch=2) ---
    batch = 2
    key = jax.random.PRNGKey(0)
    kx, kt = jax.random.split(key)
    logits = jax.random.normal(kx, (batch, seq, vocab), dtype=jnp.float32)
    x_logprobs = jax.nn.log_softmax(logits, axis=-1)   # KLDiv expects log-probs
    target = jax.random.randint(kt, (batch, seq), 1, vocab, dtype=jnp.int32)
    target = target.at[1, 2].set(padding_idx)          # exercise padding-row path

    for criterion, xin in (("kldiv", x_logprobs), ("ce", logits)):
        loss_fn = LabelSmoothingPallas(level_sizes, padding_idx, criterion,
                                       smoothing)
        loss = loss_fn(xin, target)
        jax.block_until_ready(loss)
        ref = _reference(xin, target, loss_fn.level_mask, loss_fn.confidence,
                         smoothing, padding_idx, criterion)
        assert jnp.allclose(loss, ref, rtol=1e-4, atol=1e-4), (criterion, loss, ref)

    # --- multi-tile / multi-slice accumulation path (forced small tiles) ---
    batch = 12
    kx2, kt2 = jax.random.split(jax.random.PRNGKey(1))
    logits2 = jax.random.normal(kx2, (batch, seq, vocab), dtype=jnp.float32)
    x_logprobs2 = jax.nn.log_softmax(logits2, axis=-1)
    target2 = jax.random.randint(kt2, (batch, seq), 1, vocab, dtype=jnp.int32)
    target2 = target2.at[0, 1].set(padding_idx)

    loss_fn = LabelSmoothingPallas(level_sizes, padding_idx, "kldiv", smoothing,
                                   num_row_slices=2)
    loss_fn._tile_n = 16   # force several grid steps, 2 slices, row padding
    loss = loss_fn(x_logprobs2, target2)
    jax.block_until_ready(loss)
    ref = _reference(x_logprobs2, target2, loss_fn.level_mask,
                     loss_fn.confidence, smoothing, padding_idx, "kldiv")
    assert jnp.allclose(loss, ref, rtol=1e-4, atol=1e-4), ("multi", loss, ref)

    print("KERNEL_OK")
</pallas_src>

<mosaic_0001>
module attributes {stable_mosaic.version = 11 : i64} {
  func.func @_label_smoothing_kernel(%arg0: i32, %arg1: i32, %arg2: memref<8x32xf32, #tpu.memory_space<vmem>>, %arg3: memref<8x32xbf16, #tpu.memory_space<vmem>>, %arg4: memref<8x1xf32, #tpu.memory_space<vmem>>, %arg5: memref<8x1xf32, #tpu.memory_space<vmem>>, %arg6: memref<8x1xi32, #tpu.memory_space<vmem>>, %arg7: memref<1x8x128xf32, #tpu.memory_space<vmem>>, %arg8: memref<8x32xf32, #tpu.memory_space<vmem>>) attributes {dimension_semantics = [#tpu.dimension_semantics<parallel>, #tpu.dimension_semantics<arbitrary>], iteration_bounds = array<i64: 1, 1>, scalar_prefetch = 0 : i64, scratch_operands = 1 : i64, tpu.core_type = #tpu.core_type<tc>, window_params = [{transform_indices = @transform_0, window_bounds = array<i64: 8, 32>}, {pipeline_mode = #tpu.pipeline_mode<synchronous>, transform_indices = @transform_1, window_bounds = array<i64: 8, 32>}, {pipeline_mode = #tpu.pipeline_mode<synchronous>, transform_indices = @transform_2, window_bounds = array<i64: 8, 1>}, {pipeline_mode = #tpu.pipeline_mode<synchronous>, transform_indices = @transform_3, window_bounds = array<i64: 8, 1>}, {transform_indices = @transform_4, window_bounds = array<i64: 8, 1>}, {transform_indices = @transform_5, window_bounds = array<i64: 1, 8, 128>}]} {
    %c0_i32 = arith.constant 0 : i32
    %0 = arith.cmpi eq, %arg1, %c0_i32 : i32
    %1 = arith.extui %0 : i1 to i32
    %c0_i32_0 = arith.constant 0 : i32
    %2 = arith.cmpi ne, %1, %c0_i32_0 : i32
    scf.if %2 {
      %cst_21 = arith.constant 0.000000e+00 : f32
      %38 = vector.broadcast %cst_21 : f32 to vector<8x32xf32>
      %c0_22 = arith.constant 0 : index
      %c0_23 = arith.constant 0 : index
      %39 = vector.load %arg8[%c0_22, %c0_23] : memref<8x32xf32, #tpu.memory_space<vmem>>, vector<8x32xf32>
      tpu.vector_store %arg8[%c0_22, %c0_23], %38 {strides = array<i32>} : memref<8x32xf32, #tpu.memory_space<vmem>>, vector<8x32xf32>,
    } else {
    }
    %c0 = arith.constant 0 : index
    %c0_1 = arith.constant 0 : index
    %3 = vector.load %arg2[%c0, %c0_1] : memref<8x32xf32, #tpu.memory_space<vmem>>, vector<8x32xf32>
    %c0_2 = arith.constant 0 : index
    %c0_3 = arith.constant 0 : index
    %4 = vector.load %arg3[%c0_2, %c0_3] : memref<8x32xbf16, #tpu.memory_space<vmem>>, vector<8x32xbf16>
    %5 = arith.extf %4 : vector<8x32xbf16> to vector<8x32xf32>
    %c0_4 = arith.constant 0 : index
    %c0_5 = arith.constant 0 : index
    %6 = vector.load %arg4[%c0_4, %c0_5] : memref<8x1xf32, #tpu.memory_space<vmem>>, vector<8x1xf32>
    %c0_6 = arith.constant 0 : index
    %c0_7 = arith.constant 0 : index
    %7 = vector.load %arg6[%c0_6, %c0_7] : memref<8x1xi32, #tpu.memory_space<vmem>>, vector<8x1xi32>
    %8 = tpu.iota {dimensions = array<i32: 1>} : vector<8x32xi32>
    %9 = vector.broadcast %7 : vector<8x1xi32> to vector<8x32xi32>
    %10 = arith.cmpi eq, %8, %9 : vector<8x32xi32>
    %c0_i32_8 = arith.constant 0 : i32
    %11 = vector.broadcast %c0_i32_8 : i32 to vector<8x1xi32>
    %12 = arith.cmpi eq, %7, %11 : vector<8x1xi32>
    %13 = vector.broadcast %6 : vector<8x1xf32> to vector<8x32xf32>
    %14 = arith.mulf %5, %13 : vector<8x32xf32>
    %cst = arith.constant 0.899999976 : f32
    %15 = vector.broadcast %cst : f32 to vector<8x32xf32>
    %16 = arith.select %10, %15, %14 : vector<8x32xi1>, vector<8x32xf32>
    %cst_9 = arith.constant 0.000000e+00 : f32
    %17 = vector.shape_cast %12 : vector<8x1xi1> to vector<8x1xi1>
    %18 = vector.broadcast %17 : vector<8x1xi1> to vector<8x32xi1>
    %19 = vector.broadcast %cst_9 : f32 to vector<8x32xf32>
    %20 = arith.select %18, %19, %16 : vector<8x32xi1>, vector<8x32xf32>
    %c0_10 = arith.constant 0 : index
    %c0_11 = arith.constant 0 : index
    %21 = vector.load %arg5[%c0_10, %c0_11] : memref<8x1xf32, #tpu.memory_space<vmem>>, vector<8x1xf32>
    %cst_12 = arith.constant -0.105360515 : f32
    %22 = vector.broadcast %cst_12 : f32 to vector<8x32xf32>
    %23 = vector.shape_cast %21 : vector<8x1xf32> to vector<8x1xf32>
    %24 = vector.broadcast %23 : vector<8x1xf32> to vector<8x32xf32>
    %25 = arith.select %10, %22, %24 : vector<8x32xi1>, vector<8x32xf32>
    %cst_13 = arith.constant 0.000000e+00 : f32
    %26 = vector.broadcast %cst_13 : f32 to vector<8x32xf32>
    %27 = arith.cmpf ogt, %20, %26 : vector<8x32xf32>
    %28 = arith.subf %25, %3 : vector<8x32xf32>
    %29 = arith.mulf %20, %28 : vector<8x32xf32>
    %cst_14 = arith.constant 0.000000e+00 : f32
    %30 = vector.broadcast %cst_14 : f32 to vector<8x32xf32>
    %31 = arith.select %27, %29, %30 : vector<8x32xi1>, vector<8x32xf32>
    %c0_15 = arith.constant 0 : index
    %c0_16 = arith.constant 0 : index
    %32 = vector.load %arg8[%c0_15, %c0_16] : memref<8x32xf32, #tpu.memory_space<vmem>>, vector<8x32xf32>
    %33 = arith.addf %32, %31 : vector<8x32xf32>
    %c0_17 = arith.constant 0 : index
    %c0_18 = arith.constant 0 : index
    %34 = vector.load %arg8[%c0_17, %c0_18] : memref<8x32xf32, #tpu.memory_space<vmem>>, vector<8x32xf32>
    tpu.vector_store %arg8[%c0_17, %c0_18], %33 {strides = array<i32>} : memref<8x32xf32, #tpu.memory_space<vmem>>, vector<8x32xf32>,
    %c0_i32_19 = arith.constant 0 : i32
    %35 = arith.cmpi eq, %arg1, %c0_i32_19 : i32
    %36 = arith.extui %35 : i1 to i32
    %c0_i32_20 = arith.constant 0 : i32
    %37 = arith.cmpi ne, %36, %c0_i32_20 : i32
    scf.if %37 {
      %c0_21 = arith.constant 0 : index
      %c0_22 = arith.constant 0 : index
      %38 = vector.load %arg8[%c0_21, %c0_22] : memref<8x32xf32, #tpu.memory_space<vmem>>, vector<8x32xf32>
      %39 = vector.shape_cast %38 : vector<8x32xf32> to vector<1x8x32xf32>
      %cst_23 = arith.constant dense<0.000000e+00> : vector<1xf32>
      %40 = vector.multi_reduction <add>, %39, %cst_23 [1, 2] : vector<1x8x32xf32> to vector<1xf32>
      %41 = vector.shape_cast %40 : vector<1xf32> to vector<1x1x1xf32>
      %42 = vector.extract %41[0, 0, 0] : f32 from vector<1x1x1xf32>
      %43 = vector.broadcast %42 : f32 to vector<1x8x128xf32>
      %c0_24 = arith.constant 0 : index
      %c0_25 = arith.constant 0 : index
      %c0_26 = arith.constant 0 : index
      %44 = vector.load %arg7[%c0_24, %c0_25, %c0_26] : memref<1x8x128xf32, #tpu.memory_space<vmem>>, vector<1x8x128xf32>
      tpu.vector_store %arg7[%c0_24, %c0_25, %c0_26], %43 {strides = array<i32>} : memref<1x8x128xf32, #tpu.memory_space<vmem>>, vector<1x8x128xf32>,
    } else {
    }
    return
  }
  func.func @transform_0(%arg0: i32, %arg1: i32) -> (i32, i32) {
    %c1_i32 = arith.constant 1 : i32
    %0 = arith.muli %arg0, %c1_i32 : i32
    %1 = arith.addi %0, %arg1 : i32
    %c0_i32 = arith.constant 0 : i32
    %c0_i32_0 = arith.constant 0 : i32
    return %1, %c0_i32 : i32, i32
  }
  func.func @transform_1(%arg0: i32, %arg1: i32) -> (i32, i32) {
    %c0_i32 = arith.constant 0 : i32
    %c0_i32_0 = arith.constant 0 : i32
    %c0_i32_1 = arith.constant 0 : i32
    return %c0_i32, %c0_i32_0 : i32, i32
  }
  func.func @transform_2(%arg0: i32, %arg1: i32) -> (i32, i32) {
    %c0_i32 = arith.constant 0 : i32
    %c0_i32_0 = arith.constant 0 : i32
    %c0_i32_1 = arith.constant 0 : i32
    return %c0_i32, %c0_i32_0 : i32, i32
  }
  func.func @transform_3(%arg0: i32, %arg1: i32) -> (i32, i32) {
    %c0_i32 = arith.constant 0 : i32
    %c0_i32_0 = arith.constant 0 : i32
    %c0_i32_1 = arith.constant 0 : i32
    return %c0_i32, %c0_i32_0 : i32, i32
  }
  func.func @transform_4(%arg0: i32, %arg1: i32) -> (i32, i32) {
    %c1_i32 = arith.constant 1 : i32
    %0 = arith.muli %arg0, %c1_i32 : i32
    %1 = arith.addi %0, %arg1 : i32
    %c0_i32 = arith.constant 0 : i32
    %c0_i32_0 = arith.constant 0 : i32
    return %1, %c0_i32 : i32, i32
  }
  func.func @transform_5(%arg0: i32, %arg1: i32) -> (i32, i32, i32) {
    %c0_i32 = arith.constant 0 : i32
    %c0_i32_0 = arith.constant 0 : i32
    %c0_i32_1 = arith.constant 0 : i32
    return %arg0, %c0_i32, %c0_i32_0 : i32, i32, i32
  }
}

</mosaic_0001>

<llo_original>
// kernel: call.1
$region0: #{call.1}
  #allocation0 [shape = 'u32[]', space=smem, size = 0x4, offset = 0x4, fixed_abs, tag = 'smem constant byte address 0x4 - core index']
  #allocation1 [shape = 'u32[72,128]{1,0:T(1,128)}', space=vmem, size = 0x9000, scoped, tag = 'internal scratch']
  #allocation2 [shape = 'f32[8,32]{1,0:T(8,128)}', space=vmem, size = 0x1000, scoped, tag = 'scratch operand']
  %s0 = inlined_call_operand.vmem [shape: f32[8,32], index: 0, kind: input, shape index: {}]
  %s1 = inlined_call_operand.vmem [shape: bf16[8,32], index: 1, kind: input, shape index: {}]
  %s2 = inlined_call_operand.vmem [shape: f32[8,1], index: 2, kind: input, shape index: {}]
  %s3 = inlined_call_operand.vmem [shape: f32[8,1], index: 3, kind: input, shape index: {}]
  %s4 = inlined_call_operand.vmem [shape: s32[8,1], index: 4, kind: input, shape index: {}]
  %s5 = inlined_call_operand.vmem [shape: f32[1,8,128], index: 5, kind: output, shape index: {}]
  %s6 = sld [smem:[#allocation0]]
  $region38: #{call.1} parent=0
    _
  %s8 = ssub.s32 1, %s6
  %s9 = scalar_select 0, %s8, %s6
  // Predicated region
  $region2: #{call.1} parent=0 // pred_check
    _
  $region3: #{call.1} parent=0 // pred_check_branch
    %11 = sbr.rel (0) target = $region5
  $region4: #{call.1} parent=0 // pred_region
    %s12 = sadd.s32 0, 0
    %p13 = scmp.lt.s32.totalorder %s12, 0
    %s14 = scalar_select %p13, %s12, 0
    %s15 = smul.addr %s14, 8
    %s16 = scalar_lea.vmem %s0, %s15
    %s17 = sadd.s32 0, 0
  $region5: #{call.1} parent=0 // pred_fallthru
    _
  // Predicated region
  $region6: #{call.1} parent=0 // pred_check
    _
  $region7: #{call.1} parent=0 // pred_check_branch
    %19 = sbr.rel (0) target = $region9
  $region8: #{call.1} parent=0 // pred_region
    _
  $region9: #{call.1} parent=0 // pred_fallthru
    _
  // Predicated region
  $region10: #{call.1} parent=0 // pred_check
    _
  $region11: #{call.1} parent=0 // pred_check_branch
    %21 = sbr.rel (0) target = $region13
  $region12: #{call.1} parent=0 // pred_region
    _
  $region13: #{call.1} parent=0 // pred_fallthru
    _
  // Predicated region
  $region14: #{call.1} parent=0 // pred_check
    _
  $region15: #{call.1} parent=0 // pred_check_branch
    %23 = sbr.rel (0) target = $region17
  $region16: #{call.1} parent=0 // pred_region
    _
  $region17: #{call.1} parent=0 // pred_fallthru
    _
  // Predicated region
  $region18: #{call.1} parent=0 // pred_check
    _
  $region19: #{call.1} parent=0 // pred_check_branch
    %25 = sbr.rel (0) target = $region21
  $region20: #{call.1} parent=0 // pred_region
    %s26 = sadd.s32 0, 0
    %p27 = scmp.lt.s32.totalorder %s26, 0
    %s28 = scalar_select %p27, %s26, 0
    %s29 = smul.addr %s28, 8
    %s30 = scalar_lea.vmem %s4, %s29
    %s31 = sadd.s32 0, 0
  $region21: #{call.1} parent=0 // pred_fallthru
    _
  %s32 = sadd.s32 0, 0
  %p33 = scmp.lt.s32.totalorder %s32, 0
  %s34 = scalar_select %p33, %s32, 0
  %s35 = smul.addr %s34, 8
  %s36 = scalar_lea.vmem %s0, %s35
  %s37 = sadd.s32 0, 0
  %p38 = scmp.lt.s32.totalorder %s37, 0
  %s39 = scalar_select %p38, %s37, 0
  %s40 = smul.addr %s39, 8
  %s41 = scalar_lea.vmem %s4, %s40
  %s42 = sadd.s32 0, 0
  %p43 = scmp.lt.s32.totalorder %s42, 0
  %s44 = scalar_select %p43, %s42, 0
  %s45 = smul.addr %s44, 8
  %s46 = scalar_lea.vmem %s0, %s45
  %s47 = sadd.s32 0, 0
  %s48 = sadd.s32 0, 0
  %p49 = scmp.lt.s32.totalorder %s48, 0
  %s50 = scalar_select %p49, %s48, 0
  %s51 = smul.addr %s50, 8
  %s52 = scalar_lea.vmem %s4, %s51
  %s53 = sadd.s32 0, 0
  %p54 = scmp.eq.s32.totalorder 0, 0
  // Predicated region
  $region22: #{call.1} parent=0 // pred_check
    %p55 = pneg %p54
  $region23: #{call.1} parent=0 // pred_check_branch
    %57 = sbr.rel (%p55) target = $region25
  $region24: #{call.1} parent=0 // pred_region
    %vm58 = vcmask 261120
    %59 = vst.msk [vmem:[#allocation2] sm:$0xff] %vm58, 0.0
  $region25: #{call.1} parent=0 // pred_fallthru
    _
  %v60 = vld [vmem:[%s46] sm:$0xff]
  %v61 = vld [vmem:[%s1] sm:$0xf]
  %v62 = vunpack.c.l.bf16 %v61
  %v63 = vld [vmem:[%s2] sm:$0xff]
  %v64 = vld [vmem:[%s52] sm:$0xff]
  %v65 = vlaneseq
  %v66 = vand.u32 %v65, 127
  %67 = vset.pattern.permute.xlu0 0
  %68 = vperm.xlu0 %67, %v64
  %v69 = vpop.permute.xlu0 %68
  %vm70 = vcmp.eq.s32.totalorder %v66, %v69
  %vm71 = vcmp.eq.s32.totalorder %v64, 0
  %73 = vset.pattern.permute.xlu0 0
  %74 = vperm.xlu0 %73, %v63
  %v75 = vpop.permute.xlu0 %74
  %v77 = vmul.f32 %v62, %v75
  %v78 = vsel %vm70, 0.9, %v77
  %v79 = vsel %vm71, 1, 0
  %80 = vset.pattern.permute.xlu0 0
  %81 = vperm.xlu0 %80, %v79
  %v82 = vpop.permute.xlu0 %81
  %vm83 = vcmp.eq.s32.totalorder %v82, 1
  %v84 = vsel %vm83, 0.0, %v78
  %v85 = vld [vmem:[%s3] sm:$0xff]
  %87 = vset.pattern.permute.xlu0 0
  %88 = vperm.xlu0 %87, %v85
  %v89 = vpop.permute.xlu0 %88
  %v91 = vsel %vm70, -0.105360515, %v89
  %vm92 = vcmp.gt.f32.partialorder %v84, 0.0
  %v93 = vsub.f32 %v91, %v60
  %v94 = vmul.f32 %v84, %v93
  %v95 = vsel %vm92, %v94, 0.0
  %v96 = vld [vmem:[#allocation2] sm:$0xff]
  %v97 = vadd.f32 %v96, %v95
  %vm98 = vcmask 261120
  %99 = vst.msk [vmem:[#allocation2] sm:$0xff] %vm98, %v97
  // Predicated region
  $region26: #{call.1} parent=0 // pred_check
    %p100 = pneg %p54
  $region27: #{call.1} parent=0 // pred_check_branch
    %102 = sbr.rel (%p100) target = $region29
  $region28: #{call.1} parent=0 // pred_region
    %v103 = vld [vmem:[#allocation2] sm:$0xff]
    %v104 = vsel %vm98, %v103, 0.0
    %105 = vadd.xlane.f32.xlu0 %v104
    %v106 = vpop.xlane.xlu0 %105
    %v107 = vrot.slane %v106, 4
    %v108 = vadd.f32 %v106, %v107
    %v109 = vrot.slane %v108, 2
    %v110 = vadd.f32 %v108, %v109
    %v111 = vrot.slane %v110, 1
    %v112 = vadd.f32 %v110, %v111
    %s113 = vtos %v112
    %v114 = vstv %s113
    %115 = vst [vmem:[%s5] sm:$0xff] %v114
  $region29: #{call.1} parent=0 // pred_fallthru
    _
  // Predicated region
  $region30: #{call.1} parent=0 // pred_check
    _
  $region31: #{call.1} parent=0 // pred_check_branch
    %117 = sbr.rel (0) target = $region33
  $region32: #{call.1} parent=0 // pred_region
    _
  $region33: #{call.1} parent=0 // pred_fallthru
    _
  // Predicated region
  $region34: #{call.1} parent=0 // pred_check
    _
  $region35: #{call.1} parent=0 // pred_check_branch
    %119 = sbr.rel (0) target = $region37
  $region36: #{call.1} parent=0 // pred_region
    _
  $region37: #{call.1} parent=0 // pred_fallthru
    _

</llo_original>
